<compile_context>
chip_gen: v7x
topology: tpu7x:2x2x1
jax: 0.10.0
libtpu: 0.0.40
codegen_flags: <defaults>
</compile_context>

<pallas_src>
import functools

import jax
import jax.numpy as jnp
from jax.experimental import pallas as pl
from jax.experimental.pallas import tpu as pltpu


def _round_up(v, m):
    return (v + m - 1) // m * m


def _cdiv(a, b):
    return (a + b - 1) // b


def _guess_tensorcores_per_chip():
    """Best-effort TensorCore-per-chip guess (megacore / v7x dual-TC)."""
    try:
        kind = jax.devices()[0].device_kind.lower()
    except Exception:
        return 1
    if "lite" in kind or "v5e" in kind or "v6e" in kind or "v6 lite" in kind:
        return 1
    if "v4" in kind or "v5p" in kind or "v7" in kind or "7x" in kind:
        return 2
    return 1


def _global_mean_pool_kernel(batch_ref, x_ref, out_ref, sums_ref, counts_ref,
                             *, n_total, mask_tail):
    # grid = (G tiles [parallel], F tiles [parallel], N tiles [arbitrary/reduction]).
    gi = pl.program_id(0)
    ni = pl.program_id(2)

    @pl.when(ni == 0)
    def _init():
        sums_ref[...] = jnp.zeros_like(sums_ref)
        counts_ref[...] = jnp.zeros_like(counts_ref)

    tg = sums_ref.shape[0]
    tn = batch_ref.shape[1]

    b = batch_ref[...]                                  # [1, TN] int32 (lane-major)
    x = x_ref[...]                                      # [TN, TF] native dtype

    if mask_tail:
        # x / batch are NOT padded in HBM: the tail N block reads OOB garbage.
        # Garbage batch lanes -> -1 (match no graph, keep counts exact);
        # garbage x rows -> 0 (NaN * 0 would poison the accumulator otherwise).
        start = ni * tn
        col_ids = start + jax.lax.broadcasted_iota(jnp.int32, (1, tn), 1)
        b = jnp.where(col_ids < n_total, b, -1)
        row_ids = start + jax.lax.broadcasted_iota(jnp.int32, (tn, 1), 0)
        x = jnp.where(row_ids < n_total, x, jnp.zeros_like(x))

    # One-hot built already transposed: [TG, TN] for this G tile; kept in x's dtype
    # so the MXU runs bf16 when x is bf16 (f32 accumulation via preferred_element_type).
    graph_ids = gi * tg + jax.lax.broadcasted_iota(jnp.int32, (tg, tn), 0)
    onehot_bool = b == graph_ids                        # [TG, TN]
    one_hot = onehot_bool.astype(x.dtype)               # exact 0/1 even in bf16

    # Segment sums on the MXU: [TG, TN] @ [TN, TF] -> [TG, TF], f32 accum.
    sums_ref[...] += jax.lax.dot_general(
        one_hot, x,
        dimension_numbers=(((1,), (0,)), ((), ())),
        preferred_element_type=jnp.float32,
    )

    # Per-graph node counts. Recomputed per F tile (cheap XLU work) so the kernel
    # stays correct when the parallel G/F axes are sharded across TensorCores.
    counts_ref[...] += jnp.sum(
        onehot_bool.astype(jnp.float32), axis=1, keepdims=True
    )

    @pl.when(ni == pl.num_programs(2) - 1)
    def _finalize():
        clamped = jnp.maximum(counts_ref[...], 1.0)     # empty graphs -> divide by 1
        inv = pl.reciprocal(clamped, approx=True)       # EUP slot (essentially free)
        inv = inv * (2.0 - clamped * inv)               # Newton step 1
        inv = inv * (2.0 - clamped * inv)               # Newton step 2 -> full f32 acc.
        out_ref[...] = (sums_ref[...] * inv).astype(out_ref.dtype)


@functools.partial(jax.jit, static_argnames=("size", "tn", "tf", "tg"))
def _global_mean_pool_impl(x, batch, size, tn, tf, tg):
    n, f = x.shape
    g = int(size)

    # Degenerate shapes: nothing to pool.
    if n == 0 or g == 0 or f == 0:
        return jnp.zeros((g, f), x.dtype)

    # ---- F tiling: minimal-slack, 128-aligned (never over-pad F to a multiple of tf)
    f_pad = _round_up(f, 128)
    tf_req = max(128, _round_up(min(int(tf), f_pad), 128))
    num_f = _cdiv(f_pad, tf_req)
    if _guess_tensorcores_per_chip() >= 2 and f_pad >= 256:
        num_f = max(num_f, 2)            # keep second TensorCore busy (v4/v5p/v7x)
    tf_eff = _round_up(_cdiv(f_pad, num_f), 128)
    num_f = _cdiv(f_pad, tf_eff)

    # ---- N tiling: lane-dense [1, TN] batch blocks; x is NOT padded in HBM.
    tn_eff = max(128, _round_up(min(int(tn), _round_up(n, 128)), 128))
    num_n = _cdiv(n, tn_eff)

    # ---- G tiling: bounds one-hot / accumulator footprint for large graph counts.
    g_pad = _round_up(g, 8)
    tg_eff = min(_round_up(min(int(tg), g_pad), 8), g_pad)
    num_g = _cdiv(g_pad, tg_eff)

    bp = batch.astype(jnp.int32).reshape(1, n)          # lane-major, no padding copy

    # Explicit VMEM budget with headroom; include the one-hot temporaries.
    itemsize = x.dtype.itemsize
    est = (
        2 * tn_eff * tf_eff * itemsize            # double-buffered x tiles
        + 2 * 8 * tn_eff * 4                      # double-buffered [1,TN] batch tiles
        + 2 * tg_eff * tf_eff * itemsize          # output buffers
        + tg_eff * tf_eff * 4                     # f32 sums scratch
        + tg_eff * 128 * 4                        # f32 counts scratch (lane-padded)
        + tg_eff * tn_eff * (8 + itemsize)        # one-hot temporaries (bool/f32/x-dtype)
    )
    try:
        vmem_cap = int(pltpu.get_tpu_info().vmem_capacity_bytes)
    except Exception:
        vmem_cap = 64 * 1024 * 1024
    # Leave ~25% headroom for compiler-internal scratch (v7x: ~48 of 64 MiB,
    # v5e/v6e: ~96 of 128 MiB).
    vmem_limit = int(min(max(2 * est, 16 * 1024 * 1024),
                         max(vmem_cap * 3 // 4, 32 * 1024 * 1024)))

    kernel = functools.partial(
        _global_mean_pool_kernel,
        n_total=n,
        mask_tail=(n % tn_eff != 0),
    )

    cost = pl.CostEstimate(
        flops=2 * n * f * g_pad,
        transcendentals=g_pad * num_f,
        bytes_accessed=n * f * itemsize + n * 4 + g * f * itemsize,
    )

    out = pl.pallas_call(
        kernel,
        out_shape=jax.ShapeDtypeStruct((g, f), x.dtype),   # exact shape; OOB writes dropped
        grid=(num_g, num_f, num_n),
        in_specs=[
            pl.BlockSpec((1, tn_eff), lambda gi, fi, ni: (0, ni)),        # batch [1, N]
            pl.BlockSpec((tn_eff, tf_eff), lambda gi, fi, ni: (ni, fi)),  # x [N, F]
        ],
        out_specs=pl.BlockSpec((tg_eff, tf_eff), lambda gi, fi, ni: (gi, fi)),
        scratch_shapes=[
            pltpu.VMEM((tg_eff, tf_eff), jnp.float32),   # running sums
            pltpu.VMEM((tg_eff, 1), jnp.float32),        # running counts
        ],
        compiler_params=pltpu.CompilerParams(
            dimension_semantics=("parallel", "parallel", "arbitrary"),
            vmem_limit_bytes=vmem_limit,
        ),
        cost_estimate=cost,
    )(bp, x)

    return out


def global_mean_pool(x, batch, size=None, *, tn=2048, tf=512, tg=512):
    """Per-graph mean pooling. Pass `size` (static) for jit-friendly use."""
    if size is None:
        # NOTE: forces a device->host sync and shape-dependent recompiles; prefer
        # passing `size` explicitly (as torch_geometric callers usually do).
        size = int(jax.device_get(jnp.max(batch))) + 1
    return _global_mean_pool_impl(x, batch, int(size), int(tn), int(tf), int(tg))


class GlobalMeanPool:
    """Pallas equivalent of the PyTorch GlobalMeanPool module (stateless)."""

    def __call__(self, x, batch, size=None):
        return global_mean_pool(x, batch, size)


if __name__ == "__main__":
    key = jax.random.PRNGKey(0)
    kx, kb = jax.random.split(key)

    N, F, G = 64, 32, 4                      # small synthetic graph batch
    x = jax.random.normal(kx, (N, F), dtype=jnp.float32)
    batch = jnp.sort(jax.random.randint(kb, (N,), 0, G, dtype=jnp.int32))

    pool = GlobalMeanPool()
    out = pool(x, batch, size=G)
    out = jax.block_until_ready(out)

    # Pure-JAX reference (segment mean with clamp-to-1 denominator).
    ref_sum = jax.ops.segment_sum(x, batch, num_segments=G)
    ref_cnt = jax.ops.segment_sum(jnp.ones((N, 1), jnp.float32), batch,
                                  num_segments=G)
    ref = ref_sum / jnp.maximum(ref_cnt, 1.0)

    assert out.shape == (G, F)
    assert jnp.allclose(out, ref, atol=1e-4, rtol=1e-4)

    # Also exercise an unaligned / multi-tile shape to cover the in-kernel
    # tail masking path (no wrapper-side padding of x anymore).
    N2, F2, G2 = 300, 150, 7
    x2 = jax.random.normal(kx, (N2, F2), dtype=jnp.float32)
    batch2 = jax.random.randint(kb, (N2,), 0, G2, dtype=jnp.int32)
    out2 = jax.block_until_ready(global_mean_pool(x2, batch2, size=G2, tn=128, tf=128))
    ref2 = (jax.ops.segment_sum(x2, batch2, num_segments=G2)
            / jnp.maximum(jax.ops.segment_sum(jnp.ones((N2, 1), jnp.float32),
                                              batch2, num_segments=G2), 1.0))
    assert out2.shape == (G2, F2)
    assert jnp.allclose(out2, ref2, atol=1e-4, rtol=1e-4)

    print("KERNEL_OK")
</pallas_src>

<mosaic_0001>
module attributes {stable_mosaic.version = 11 : i64} {
  func.func @_global_mean_pool_kernel(%arg0: i32, %arg1: i32, %arg2: i32, %arg3: memref<1x128xi32, #tpu.memory_space<vmem>>, %arg4: memref<128x128xf32, #tpu.memory_space<vmem>>, %arg5: memref<8x128xf32, #tpu.memory_space<vmem>>, %arg6: memref<8x128xf32, #tpu.memory_space<vmem>>, %arg7: memref<8x1xf32, #tpu.memory_space<vmem>>) attributes {dimension_semantics = [#tpu.dimension_semantics<parallel>, #tpu.dimension_semantics<parallel>, #tpu.dimension_semantics<arbitrary>], iteration_bounds = array<i64: 1, 1, 1>, scalar_prefetch = 0 : i64, scratch_operands = 2 : i64, tpu.core_type = #tpu.core_type<tc>, window_params = [{transform_indices = @transform_0, window_bounds = array<i64: 1, 128>}, {transform_indices = @transform_1, window_bounds = array<i64: 128, 128>}, {transform_indices = @transform_2, window_bounds = array<i64: 8, 128>}]} {
    %c0_i32 = arith.constant 0 : i32
    %0 = arith.cmpi eq, %arg2, %c0_i32 : i32
    %1 = arith.extui %0 : i1 to i32
    %c0_i32_0 = arith.constant 0 : i32
    %2 = arith.cmpi ne, %1, %c0_i32_0 : i32
    scf.if %2 {
      %cst_17 = arith.constant 0.000000e+00 : f32
      %44 = vector.broadcast %cst_17 : f32 to vector<8x128xf32>
      %c0_18 = arith.constant 0 : index
      %c0_19 = arith.constant 0 : index
      %45 = vector.load %arg6[%c0_18, %c0_19] : memref<8x128xf32, #tpu.memory_space<vmem>>, vector<8x128xf32>
      tpu.vector_store %arg6[%c0_18, %c0_19], %44 {strides = array<i32>} : memref<8x128xf32, #tpu.memory_space<vmem>>, vector<8x128xf32>,
      %cst_20 = arith.constant 0.000000e+00 : f32
      %46 = vector.broadcast %cst_20 : f32 to vector<8x1xf32>
      %c0_21 = arith.constant 0 : index
      %c0_22 = arith.constant 0 : index
      %47 = vector.load %arg7[%c0_21, %c0_22] : memref<8x1xf32, #tpu.memory_space<vmem>>, vector<8x1xf32>
      tpu.vector_store %arg7[%c0_21, %c0_22], %46 {strides = array<i32>} : memref<8x1xf32, #tpu.memory_space<vmem>>, vector<8x1xf32>,
    } else {
    }
    %c0 = arith.constant 0 : index
    %c0_1 = arith.constant 0 : index
    %3 = vector.load %arg3[%c0, %c0_1] : memref<1x128xi32, #tpu.memory_space<vmem>>, vector<1x128xi32>
    %c0_2 = arith.constant 0 : index
    %c0_3 = arith.constant 0 : index
    %4 = vector.load %arg4[%c0_2, %c0_3] : memref<128x128xf32, #tpu.memory_space<vmem>>, vector<128x128xf32>
    %c128_i32 = arith.constant 128 : i32
    %5 = arith.muli %arg2, %c128_i32 : i32
    %6 = tpu.iota {dimensions = array<i32: 1>} : vector<1x128xi32>
    %7 = vector.broadcast %5 : i32 to vector<1x128xi32>
    %8 = arith.addi %7, %6 : vector<1x128xi32>
    %c64_i32 = arith.constant 64 : i32
    %9 = vector.broadcast %c64_i32 : i32 to vector<1x128xi32>
    %10 = arith.cmpi slt, %8, %9 : vector<1x128xi32>
    %c-1_i32 = arith.constant -1 : i32
    %11 = vector.broadcast %c-1_i32 : i32 to vector<1x128xi32>
    %12 = arith.select %10, %3, %11 : vector<1x128xi1>, vector<1x128xi32>
    %13 = tpu.iota {dimensions = array<i32: 0>} : vector<128x1xi32>
    %14 = vector.broadcast %5 : i32 to vector<128x1xi32>
    %15 = arith.addi %14, %13 : vector<128x1xi32>
    %c64_i32_4 = arith.constant 64 : i32
    %16 = vector.broadcast %c64_i32_4 : i32 to vector<128x1xi32>
    %17 = arith.cmpi slt, %15, %16 : vector<128x1xi32>
    %cst = arith.constant 0.000000e+00 : f32
    %18 = vector.broadcast %cst : f32 to vector<128x128xf32>
    %19 = vector.shape_cast %17 : vector<128x1xi1> to vector<128x1xi1>
    %20 = vector.broadcast %19 : vector<128x1xi1> to vector<128x128xi1>
    %21 = arith.select %20, %4, %18 : vector<128x128xi1>, vector<128x128xf32>
    %c8_i32 = arith.constant 8 : i32
    %22 = arith.muli %arg0, %c8_i32 : i32
    %23 = tpu.iota {dimensions = array<i32: 0>} : vector<8x128xi32>
    %24 = vector.broadcast %22 : i32 to vector<8x128xi32>
    %25 = arith.addi %24, %23 : vector<8x128xi32>
    %26 = vector.broadcast %12 : vector<1x128xi32> to vector<8x128xi32>
    %27 = arith.cmpi eq, %26, %25 : vector<8x128xi32>
    %28 = arith.extui %27 : vector<8x128xi1> to vector<8x128xi32>
    %29 = arith.sitofp %28 : vector<8x128xi32> to vector<8x128xf32>
    %c0_5 = arith.constant 0 : index
    %c0_6 = arith.constant 0 : index
    %30 = vector.load %arg6[%c0_5, %c0_6] : memref<8x128xf32, #tpu.memory_space<vmem>>, vector<8x128xf32>
    %cst_7 = arith.constant dense<0.000000e+00> : vector<8x128xf32>
    %31 = tpu.matmul %29, %21, %cst_7 {dimension_numbers = #tpu.dot_dimension_numbers<[1], [0], [0], [1], [0, 0, 1, 1], [], []>} : vector<8x128xf32>, vector<128x128xf32>, vector<8x128xf32> -> vector<8x128xf32>
    %32 = arith.addf %30, %31 : vector<8x128xf32>
    %c0_8 = arith.constant 0 : index
    %c0_9 = arith.constant 0 : index
    %33 = vector.load %arg6[%c0_8, %c0_9] : memref<8x128xf32, #tpu.memory_space<vmem>>, vector<8x128xf32>
    tpu.vector_store %arg6[%c0_8, %c0_9], %32 {strides = array<i32>} : memref<8x128xf32, #tpu.memory_space<vmem>>, vector<8x128xf32>,
    %c0_10 = arith.constant 0 : index
    %c0_11 = arith.constant 0 : index
    %34 = vector.load %arg7[%c0_10, %c0_11] : memref<8x1xf32, #tpu.memory_space<vmem>>, vector<8x1xf32>
    %35 = arith.extui %27 : vector<8x128xi1> to vector<8x128xi32>
    %36 = arith.sitofp %35 : vector<8x128xi32> to vector<8x128xf32>
    %cst_12 = arith.constant dense<0.000000e+00> : vector<8xf32>
    %37 = vector.multi_reduction <add>, %36, %cst_12 [1] : vector<8x128xf32> to vector<8xf32>
    %38 = vector.shape_cast %37 : vector<8xf32> to vector<8x1xf32>
    %39 = arith.addf %34, %38 : vector<8x1xf32>
    %c0_13 = arith.constant 0 : index
    %c0_14 = arith.constant 0 : index
    %40 = vector.load %arg7[%c0_13, %c0_14] : memref<8x1xf32, #tpu.memory_space<vmem>>, vector<8x1xf32>
    tpu.vector_store %arg7[%c0_13, %c0_14], %39 {strides = array<i32>} : memref<8x1xf32, #tpu.memory_space<vmem>>, vector<8x1xf32>,
    %c0_i32_15 = arith.constant 0 : i32
    %41 = arith.cmpi eq, %arg2, %c0_i32_15 : i32
    %42 = arith.extui %41 : i1 to i32
    %c0_i32_16 = arith.constant 0 : i32
    %43 = arith.cmpi ne, %42, %c0_i32_16 : i32
    scf.if %43 {
      %c0_17 = arith.constant 0 : index
      %c0_18 = arith.constant 0 : index
      %44 = vector.load %arg7[%c0_17, %c0_18] : memref<8x1xf32, #tpu.memory_space<vmem>>, vector<8x1xf32>
      %cst_19 = arith.constant 1.000000e+00 : f32
      %45 = vector.broadcast %cst_19 : f32 to vector<8x1xf32>
      %46 = arith.maximumf %44, %45 : vector<8x1xf32>
      %47 = tpu.reciprocal %46 {approx = true} : vector<8x1xf32> -> vector<8x1xf32>
      %48 = arith.mulf %46, %47 : vector<8x1xf32>
      %cst_20 = arith.constant 2.000000e+00 : f32
      %49 = vector.broadcast %cst_20 : f32 to vector<8x1xf32>
      %50 = arith.subf %49, %48 : vector<8x1xf32>
      %51 = arith.mulf %47, %50 : vector<8x1xf32>
      %52 = arith.mulf %46, %51 : vector<8x1xf32>
      %cst_21 = arith.constant 2.000000e+00 : f32
      %53 = vector.broadcast %cst_21 : f32 to vector<8x1xf32>
      %54 = arith.subf %53, %52 : vector<8x1xf32>
      %55 = arith.mulf %51, %54 : vector<8x1xf32>
      %c0_22 = arith.constant 0 : index
      %c0_23 = arith.constant 0 : index
      %56 = vector.load %arg6[%c0_22, %c0_23] : memref<8x128xf32, #tpu.memory_space<vmem>>, vector<8x128xf32>
      %57 = vector.broadcast %55 : vector<8x1xf32> to vector<8x128xf32>
      %58 = arith.mulf %56, %57 : vector<8x128xf32>
      %c0_24 = arith.constant 0 : index
      %c0_25 = arith.constant 0 : index
      %59 = vector.load %arg5[%c0_24, %c0_25] : memref<8x128xf32, #tpu.memory_space<vmem>>, vector<8x128xf32>
      tpu.vector_store %arg5[%c0_24, %c0_25], %58 {strides = array<i32>} : memref<8x128xf32, #tpu.memory_space<vmem>>, vector<8x128xf32>,
    } else {
    }
    return
  }
  func.func @transform_0(%arg0: i32, %arg1: i32, %arg2: i32) -> (i32, i32) {
    %c0_i32 = arith.constant 0 : i32
    %c0_i32_0 = arith.constant 0 : i32
    return %c0_i32, %arg2 : i32, i32
  }
  func.func @transform_1(%arg0: i32, %arg1: i32, %arg2: i32) -> (i32, i32) {
    %c0_i32 = arith.constant 0 : i32
    return %arg2, %arg1 : i32, i32
  }
  func.func @transform_2(%arg0: i32, %arg1: i32, %arg2: i32) -> (i32, i32) {
    %c0_i32 = arith.constant 0 : i32
    return %arg0, %arg1 : i32, i32
  }
}

</mosaic_0001>

<llo_original>
// kernel: _global_mean_pool_impl.1
$region0: #{_global_mean_pool_impl.1}
  #allocation0 [shape = 'u32[]', space=smem, size = 0x4, offset = 0x4, fixed_abs, tag = 'smem constant byte address 0x4 - core index']
  #allocation1 [shape = 'u32[144,128]{1,0:T(1,128)}', space=vmem, size = 0x12000, scoped, tag = 'internal scratch']
  #allocation2 [shape = 'f32[8,128]{1,0:T(8,128)}', space=vmem, size = 0x1000, scoped, tag = 'scratch operand']
  #allocation3 [shape = 'f32[8,1]{1,0:T(8,128)}', space=vmem, size = 0x1000, scoped, tag = 'scratch operand']
  %s0 = inlined_call_operand.vmem [shape: s32[1,64], index: 0, kind: input, shape index: {}]
  %s1 = inlined_call_operand.vmem [shape: f32[64,32], index: 1, kind: input, shape index: {}]
  %s2 = inlined_call_operand.hbm [shape: f32[4,32], index: 2, kind: output, shape index: {}]
  %s3 = sld [smem:[#allocation0]]
  $region26: #{_global_mean_pool_impl.1} parent=0
    _
  %s5 = ssub.s32 1, %s3
  %s6 = scalar_select 0, %s5, %s3
  $region1: #{_global_mean_pool_impl.1} parent=0
    #allocation4 [shape = 'u8[4096]{0}', space=vmem, size = 0x1000, scoped, tag = 'output window, operand 0, single buffered']
    #allocation5 [shape = 's32[1]{0}', space=sflag, size = 0x4, scoped, tag = 'scoped memory for _global_mean_pool_impl.1']
    %7 = vsyncpa [#allocation5], 0
    // Predicated region
    $region2: #{_global_mean_pool_impl.1} parent=1 // pred_check
      _
    $region3: #{_global_mean_pool_impl.1} parent=1 // pred_check_branch
      %9 = sbr.rel (0) target = $region5
    $region4: #{_global_mean_pool_impl.1} parent=1 // pred_region
      _
    $region5: #{_global_mean_pool_impl.1} parent=1 // pred_fallthru
      _
    // Predicated region
    $region6: #{_global_mean_pool_impl.1} parent=1 // pred_check
      _
    $region7: #{_global_mean_pool_impl.1} parent=1 // pred_check_branch
      %11 = sbr.rel (0) target = $region9
    $region8: #{_global_mean_pool_impl.1} parent=1 // pred_region
      _
    $region9: #{_global_mean_pool_impl.1} parent=1 // pred_fallthru
      _
    %p12 = scmp.eq.s32.totalorder 0, 0
    // Predicated region
    $region10: #{_global_mean_pool_impl.1} parent=1 // pred_check
      %p13 = pneg %p12
    $region11: #{_global_mean_pool_impl.1} parent=1 // pred_check_branch
      %15 = sbr.rel (%p13) target = $region13
    $region12: #{_global_mean_pool_impl.1} parent=1 // pred_region
      %16 = vst [vmem:[#allocation2] sm:$0xff] 0.0
      %vm17 = vcmask 7168
      %18 = vst.msk [vmem:[#allocation3] sm:$0xff] %vm17, 0.0
    $region13: #{_global_mean_pool_impl.1} parent=1 // pred_fallthru
      _
    %v19 = vld [vmem:[%s0] sm:$0x1]
    %v20 = vld [vmem:[%s1] sm:$0xff]
    %v21 = vld [vmem:[%s1 + $0x8] sm:$0xff]
    %v22 = vld [vmem:[%s1 + $0x10] sm:$0xff]
    %v23 = vld [vmem:[%s1 + $0x18] sm:$0xff]
    %v24 = vld [vmem:[%s1 + $0x20] sm:$0xff]
    %v25 = vld [vmem:[%s1 + $0x28] sm:$0xff]
    %v26 = vld [vmem:[%s1 + $0x30] sm:$0xff]
    %v27 = vld [vmem:[%s1 + $0x38] sm:$0xff]
    %v28 = vld [vmem:[%s1 + $0x40] sm:$0xff]
    %v29 = vld [vmem:[%s1 + $0x48] sm:$0xff]
    %v30 = vld [vmem:[%s1 + $0x50] sm:$0xff]
    %v31 = vld [vmem:[%s1 + $0x58] sm:$0xff]
    %v32 = vld [vmem:[%s1 + $0x60] sm:$0xff]
    %v33 = vld [vmem:[%s1 + $0x68] sm:$0xff]
    %v34 = vld [vmem:[%s1 + $0x70] sm:$0xff]
    %v35 = vld [vmem:[%s1 + $0x78] sm:$0xff]
    %s36 = smul.u32 0, 128
    %v37 = vlaneseq
    %v38 = vand.u32 %v37, 127
    %v39 = vstv %s36
    %v40 = vadd.s32 %v39, %v38
    %vm41 = vcmp.lt.s32.totalorder %v40, 64
    %v42 = vsel %vm41, %v19, 4294967295
    %v43 = vlaneseq
    %v44 = vshrl.u32 %v43, 7
    %v45 = vadd.s32 %v44, 8
    %v46 = vadd.s32 %v44, 16
    %v47 = vadd.s32 %v44, 24
    %v48 = vadd.s32 %v44, 32
    %v49 = vadd.s32 %v44, 40
    %v50 = vadd.s32 %v44, 48
    %v51 = vadd.s32 %v44, 56
    %v52 = vadd.s32 %v44, 64
    %v53 = vadd.s32 %v44, 72
    %v54 = vadd.s32 %v44, 80
    %v55 = vadd.s32 %v44, 88
    %v56 = vadd.s32 %v44, 96
    %v57 = vadd.s32 %v44, 104
    %v58 = vadd.s32 %v44, 112
    %v59 = vadd.s32 %v44, 120
    %v60 = vadd.s32 %v39, %v44
    %v61 = vadd.s32 %v39, %v45
    %v62 = vadd.s32 %v39, %v46
    %v63 = vadd.s32 %v39, %v47
    %v64 = vadd.s32 %v39, %v48
    %v65 = vadd.s32 %v39, %v49
    %v66 = vadd.s32 %v39, %v50
    %v67 = vadd.s32 %v39, %v51
    %v68 = vadd.s32 %v39, %v52
    %v69 = vadd.s32 %v39, %v53
    %v70 = vadd.s32 %v39, %v54
    %v71 = vadd.s32 %v39, %v55
    %v72 = vadd.s32 %v39, %v56
    %v73 = vadd.s32 %v39, %v57
    %v74 = vadd.s32 %v39, %v58
    %v75 = vadd.s32 %v39, %v59
    %vm76 = vcmp.lt.s32.totalorder %v60, 64
    %vm77 = vcmp.lt.s32.totalorder %v61, 64
    %vm78 = vcmp.lt.s32.totalorder %v62, 64
    %vm79 = vcmp.lt.s32.totalorder %v63, 64
    %vm80 = vcmp.lt.s32.totalorder %v64, 64
    %vm81 = vcmp.lt.s32.totalorder %v65, 64
    %vm82 = vcmp.lt.s32.totalorder %v66, 64
    %vm83 = vcmp.lt.s32.totalorder %v67, 64
    %vm84 = vcmp.lt.s32.totalorder %v68, 64
    %vm85 = vcmp.lt.s32.totalorder %v69, 64
    %vm86 = vcmp.lt.s32.totalorder %v70, 64
    %vm87 = vcmp.lt.s32.totalorder %v71, 64
    %vm88 = vcmp.lt.s32.totalorder %v72, 64
    %vm89 = vcmp.lt.s32.totalorder %v73, 64
    %vm90 = vcmp.lt.s32.totalorder %v74, 64
    %vm91 = vcmp.lt.s32.totalorder %v75, 64
    %v92 = vsel %vm76, 1, 0
    %v93 = vsel %vm77, 1, 0
    %v94 = vsel %vm78, 1, 0
    %v95 = vsel %vm79, 1, 0
    %v96 = vsel %vm80, 1, 0
    %v97 = vsel %vm81, 1, 0
    %v98 = vsel %vm82, 1, 0
    %v99 = vsel %vm83, 1, 0
    %v100 = vsel %vm84, 1, 0
    %v101 = vsel %vm85, 1, 0
    %v102 = vsel %vm86, 1, 0
    %v103 = vsel %vm87, 1, 0
    %v104 = vsel %vm88, 1, 0
    %v105 = vsel %vm89, 1, 0
    %v106 = vsel %vm90, 1, 0
    %v107 = vsel %vm91, 1, 0
    %vm108 = vcmp.eq.s32.totalorder %v92, 1
    %vm109 = vcmp.eq.s32.totalorder %v93, 1
    %vm110 = vcmp.eq.s32.totalorder %v94, 1
    %vm111 = vcmp.eq.s32.totalorder %v95, 1
    %vm112 = vcmp.eq.s32.totalorder %v96, 1
    %vm113 = vcmp.eq.s32.totalorder %v97, 1
    %vm114 = vcmp.eq.s32.totalorder %v98, 1
    %vm115 = vcmp.eq.s32.totalorder %v99, 1
    %vm116 = vcmp.eq.s32.totalorder %v100, 1
    %vm117 = vcmp.eq.s32.totalorder %v101, 1
    %vm118 = vcmp.eq.s32.totalorder %v102, 1
    %vm119 = vcmp.eq.s32.totalorder %v103, 1
    %vm120 = vcmp.eq.s32.totalorder %v104, 1
    %vm121 = vcmp.eq.s32.totalorder %v105, 1
    %vm122 = vcmp.eq.s32.totalorder %v106, 1
    %vm123 = vcmp.eq.s32.totalorder %v107, 1
    %v124 = vsel %vm108, %v20, 0.0
    %v125 = vsel %vm109, %v21, 0.0
    %v126 = vsel %vm110, %v22, 0.0
    %v127 = vsel %vm111, %v23, 0.0
    %v128 = vsel %vm112, %v24, 0.0
    %v129 = vsel %vm113, %v25, 0.0
    %v130 = vsel %vm114, %v26, 0.0
    %v131 = vsel %vm115, %v27, 0.0
    %v132 = vsel %vm116, %v28, 0.0
    %v133 = vsel %vm117, %v29, 0.0
    %v134 = vsel %vm118, %v30, 0.0
    %v135 = vsel %vm119, %v31, 0.0
    %v136 = vsel %vm120, %v32, 0.0
    %v137 = vsel %vm121, %v33, 0.0
    %v138 = vsel %vm122, %v34, 0.0
    %v139 = vsel %vm123, %v35, 0.0
    %s140 = smul.u32 0, 8
    %v141 = vstv %s140
    %v142 = vadd.s32 %v141, %v44
    %v143 = vlaneseq
    %v144 = vshrl.u32 %v143, 7
    %v145 = vsub.s32 0, %v144
    %v146 = vrot.slane %v42, %v145
    %vm147 = vcmp.eq.s32.totalorder %v146, %v142
    %v148 = vsel %vm147, 1, 0
    %v149 = vcvt.s32.f32 %v148
    %v150 = vld [vmem:[#allocation2] sm:$0xff]
    %151 = vmatprep.subr.mxu0 0.0
    %152 = vmatpush1.msra.mxu0 %v124
    %153 = vmatprep.subr.mxu0 0.0
    %154 = vmatpush1.msra.mxu0 %v125
    %155 = vmatprep.subr.mxu0 0.0
    %156 = vmatpush1.msra.mxu0 %v126
    %157 = vmatprep.subr.mxu0 0.0
    %158 = vmatpush1.msra.mxu0 %v127
    %159 = vmatprep.subr.mxu0 0.0
    %160 = vmatpush1.msra.mxu0 %v128
    %161 = vmatprep.subr.mxu0 0.0
    %162 = vmatpush1.msra.mxu0 %v129
    %163 = vmatprep.subr.mxu0 0.0
    %164 = vmatpush1.msra.mxu0 %v130
    %165 = vmatprep.subr.mxu0 0.0
    %166 = vmatpush1.msra.mxu0 %v131
    %167 = vmatprep.subr.mxu0 0.0
    %168 = vmatpush1.msra.mxu0 %v132
    %169 = vmatprep.subr.mxu0 0.0
    %170 = vmatpush1.msra.mxu0 %v133
    %171 = vmatprep.subr.mxu0 0.0
    %172 = vmatpush1.msra.mxu0 %v134
    %173 = vmatprep.subr.mxu0 0.0
    %174 = vmatpush1.msra.mxu0 %v135
    %175 = vmatprep.subr.mxu0 0.0
    %176 = vmatpush1.msra.mxu0 %v136
    %177 = vmatprep.subr.mxu0 0.0
    %178 = vmatpush1.msra.mxu0 %v137
    %179 = vmatprep.subr.mxu0 0.0
    %180 = vmatpush1.msra.mxu0 %v138
    %181 = vmatprep.subr.mxu0 0.0
    %182 = vmatpush1.msra.mxu0 %v139
    %183 = vmatprep.subr.mxu0 0.0
    %184 = vmatpush1.msra.mxu0 0.0
    %185 = vmatprep.subr.mxu0 0.0
    %186 = vmatpush1.msra.mxu0 0.0
    %187 = vmatprep.subr.mxu0 0.0
    %188 = vmatpush1.msra.mxu0 0.0
    %189 = vmatprep.subr.mxu0 0.0
    %190 = vmatpush1.msra.mxu0 0.0
    %191 = vmatprep.subr.mxu0 0.0
    %192 = vmatpush1.msra.mxu0 0.0
    %193 = vmatprep.subr.mxu0 0.0
    %194 = vmatpush1.msra.mxu0 0.0
    %195 = vmatprep.subr.mxu0 0.0
    %196 = vmatpush1.msra.mxu0 0.0
    %197 = vmatprep.subr.mxu0 0.0
    %198 = vmatpush1.msra.mxu0 0.0
    %199 = vmatprep.subr.mxu0 0.0
    %200 = vmatpush1.msra.mxu0 0.0
    %201 = vmatprep.subr.mxu0 0.0
    %202 = vmatpush1.msra.mxu0 0.0
    %203 = vmatprep.subr.mxu0 0.0
    %204 = vmatpush1.msra.mxu0 0.0
    %205 = vmatprep.subr.mxu0 0.0
    %206 = vmatpush1.msra.mxu0 0.0
    %207 = vmatprep.subr.mxu0 0.0
    %208 = vmatpush1.msra.mxu0 0.0
    %209 = vmatprep.subr.mxu0 0.0
    %210 = vmatpush1.msra.mxu0 0.0
    %211 = vmatprep.subr.mxu0 0.0
    %212 = vmatpush1.msra.mxu0 0.0
    %213 = vmatprep.subr.mxu0 0.0
    %214 = vmatpush1.msra.mxu0 0.0
    %215 = vmatprep.mubr.f32.mxu0 0.0
    %216 = vmatmul.mubr.f32.gmra.mrb[0].mxu0 %v149
    %v217 = vpop.f32.mrb[0].mxu0
    %v218 = vadd.f32 0.0, %v217
    %v219 = vpop.f32.mrb[0].mxu0
    %220 = vdwg.mxu0
    %v221 = vadd.f32 %v150, %v218
    %222 = vst [vmem:[#allocation2] sm:$0xff] %v221
    %v223 = vld [vmem:[#allocation3] sm:$0xff]
    %224 = vadd.xlane.f32.xlu0 %v149
    %v225 = vpop.xlane.xlu0 %224
    %v226 = vadd.f32 %v223, %v225
    %vm227 = vcmask 7168
    %228 = vst.msk [vmem:[#allocation3] sm:$0xff] %vm227, %v226
    // Predicated region
    $region14: #{_global_mean_pool_impl.1} parent=1 // pred_check
      %p229 = pneg %p12
    $region15: #{_global_mean_pool_impl.1} parent=1 // pred_check_branch
      %231 = sbr.rel (%p229) target = $region17
    $region16: #{_global_mean_pool_impl.1} parent=1 // pred_region
      %v232 = vld [vmem:[#allocation3] sm:$0xff]
      %v233 = vmax.f32 %v232, 1.0
      %v234 = vrcp.pop %v233
      %v235 = vmul.f32 %v233, %v234
      %v236 = vsub.f32 2.0, %v235
      %v237 = vmul.f32 %v234, %v236
      %v238 = vmul.f32 %v233, %v237
      %v239 = vsub.f32 2.0, %v238
      %v240 = vmul.f32 %v237, %v239
      %v241 = vld [vmem:[#allocation2] sm:$0xff]
      %243 = vset.pattern.permute.xlu0 0
      %244 = vperm.xlu0 %243, %v240
      %v245 = vpop.permute.xlu0 %244
      %v247 = vmul.f32 %v241, %v245
      %248 = vst [vmem:[#allocation4] sm:$0xff] %v247
    $region17: #{_global_mean_pool_impl.1} parent=1 // pred_fallthru
      _
    // Predicated region
    $region18: #{_global_mean_pool_impl.1} parent=1 // pred_check
      _
    $region19: #{_global_mean_pool_impl.1} parent=1 // pred_check_branch
      %250 = sbr.rel (0) target = $region21
    $region20: #{_global_mean_pool_impl.1} parent=1 // pred_region
      %s252 = ssub.s32 128, 64
      %253 = vsyncadd [#allocation5], %s252
      %s254 = sshll.u32 [#allocation4], 4
      %s255 = int_to_ptr.vmem [resolvable:$true] %s254
      %260 = dma.vmem_to_hbm [thread:$0]  %s255, 64, %s2, [#allocation5], 64, 64, 4
    $region21: #{_global_mean_pool_impl.1} parent=1 // pred_fallthru
      _
    // Predicated region
    $region22: #{_global_mean_pool_impl.1} parent=1 // pred_check
      _
    $region23: #{_global_mean_pool_impl.1} parent=1 // pred_check_branch
      %262 = sbr.rel (0) target = $region25
    $region24: #{_global_mean_pool_impl.1} parent=1 // pred_region
      %263 = dma.done [#allocation5], 128
    $region25: #{_global_mean_pool_impl.1} parent=1 // pred_fallthru
      _
    %264 = vsyncpa [#allocation5], 1

</llo_original>
